<compile_context>
chip_gen: v5e
topology: v5e:2x2
jax: 0.10.0
libtpu: 0.0.40
codegen_flags: <defaults>
</compile_context>

<pallas_src>
import functools
from types import SimpleNamespace

import jax
import jax.numpy as jnp
from jax.experimental import pallas as pl
from jax.experimental.pallas import tpu as pltpu

LANE = 128
SUBLANE = 8
TILE_ROWS = 512  # (512, 128) f32 block = 256 KiB; 4 inputs x 2 bufs ~= 2 MiB VMEM


# ----------------------------- in-kernel helpers ---------------------------- #

def _smooth_l1_elem(d):
    """PyTorch SmoothL1Loss with beta=1.0, elementwise."""
    ad = jnp.abs(d)
    return jnp.where(ad < 1.0, 0.5 * d * d, ad - 0.5)


def _masked_l1_elem(acc_map, occ):
    """acc_map[occ==1] = 1 (functional), then |acc_map - occ| elementwise."""
    am = jnp.where(occ == 1.0, 1.0, acc_map)
    return jnp.abs(am - occ)


def _valid_mask(step, shape, n_valid, tile_rows):
    """Mask for elements whose global flat index is < n_valid (true length)."""
    row = jax.lax.broadcasted_iota(jnp.int32, shape, 0)
    col = jax.lax.broadcasted_iota(jnp.int32, shape, 1)
    gidx = (step * tile_rows + row) * LANE + col
    return gidx < n_valid


def _accumulate(acc_ref, vals):
    """Fold a (tile_rows, LANE) block into the (8,128) accumulator (VPU adds)."""
    acc_ref[...] += vals.reshape(-1, SUBLANE, LANE).sum(axis=0)


# ----------------------------- kernels -------------------------------------- #

def _smooth_l1_kernel(pred_ref, tgt_ref, out_ref, acc_ref, *, n_valid, tile_rows):
    """Sum of smooth-L1 over all tiles; emits (8,128) lane-dense partial sums."""
    step = pl.program_id(0)

    @pl.when(step == 0)
    def _():
        acc_ref[...] = jnp.zeros_like(acc_ref)

    d = pred_ref[...].astype(jnp.float32) - tgt_ref[...].astype(jnp.float32)
    per = _smooth_l1_elem(d)
    per = jnp.where(_valid_mask(step, per.shape, n_valid, tile_rows), per, 0.0)
    _accumulate(acc_ref, per)

    @pl.when(step == pl.num_programs(0) - 1)
    def _():
        out_ref[...] = acc_ref[...]


def _fused_loss_kernel(pred_ref, tgt_ref, accmap_ref, occ_ref,
                       rgb_out_ref, mask_out_ref,
                       rgb_acc, mask_acc,
                       *, n_rgb, n_mask, steps_rgb, steps_mask,
                       tile_rgb, tile_mask):
    """Both losses in one grid pass: smooth-L1(pred,tgt) and |mask(acc)-occ|."""
    step = pl.program_id(0)

    @pl.when(step == 0)
    def _():
        rgb_acc[...] = jnp.zeros_like(rgb_acc)
        mask_acc[...] = jnp.zeros_like(mask_acc)

    @pl.when(step < steps_rgb)
    def _():
        d = pred_ref[...].astype(jnp.float32) - tgt_ref[...].astype(jnp.float32)
        per = _smooth_l1_elem(d)
        per = jnp.where(_valid_mask(step, per.shape, n_rgb, tile_rgb), per, 0.0)
        _accumulate(rgb_acc, per)

    @pl.when(step < steps_mask)
    def _():
        am = accmap_ref[...].astype(jnp.float32)
        oc = occ_ref[...].astype(jnp.float32)
        per = _masked_l1_elem(am, oc)
        per = jnp.where(_valid_mask(step, per.shape, n_mask, tile_mask), per, 0.0)
        _accumulate(mask_acc, per)

    @pl.when(step == pl.num_programs(0) - 1)
    def _():
        rgb_out_ref[...] = rgb_acc[...]
        mask_out_ref[...] = mask_acc[...]


# ----------------------------- wrappers -------------------------------------- #

def _prep(x):
    """Flatten to 1-D (native dtype) and view as (rows, LANE) with rows % 8 == 0.

    The reshape of contiguous data is free; a zero-pad copy is only emitted when
    the element count is not already a multiple of SUBLANE*LANE.  Padding /
    garbage beyond the true length is masked inside the kernel, so the value of
    the padding never matters.  Returns (2-D view, true element count).
    """
    flat = x.reshape(-1)
    n = flat.shape[0]
    chunk = SUBLANE * LANE
    rem = n % chunk
    if rem:
        flat = jnp.pad(flat, (0, chunk - rem))
    return flat.reshape(-1, LANE), n


def _tile_rows(rows):
    """Largest tile (<= TILE_ROWS) that is a multiple of 8; rows is already %8==0."""
    return min(TILE_ROWS, rows)


def _clamped_index_map(num_blocks):
    """Block index map clamped to the last valid block (stays in-bounds when the
    shared fused grid is longer than this input's own grid; the unchanged block
    index lets the pipeline skip the redundant DMA)."""
    last = num_blocks - 1

    def index_map(i):
        return (jnp.minimum(i, last), 0)

    return index_map


def smooth_l1_loss_mean(pred, target):
    """mean(smooth_l1(pred - target)) via a single-reduction Pallas kernel."""
    p2d, n = _prep(pred)
    t2d, _ = _prep(target)
    rows = p2d.shape[0]
    tile = _tile_rows(rows)
    steps = pl.cdiv(rows, tile)

    kernel = functools.partial(_smooth_l1_kernel, n_valid=n, tile_rows=tile)
    part = pl.pallas_call(
        kernel,
        out_shape=jax.ShapeDtypeStruct((SUBLANE, LANE), jnp.float32),
        grid_spec=pltpu.PrefetchScalarGridSpec(
            num_scalar_prefetch=0,
            grid=(steps,),
            in_specs=[
                pl.BlockSpec((tile, LANE), lambda i: (i, 0)),
                pl.BlockSpec((tile, LANE), lambda i: (i, 0)),
            ],
            out_specs=pl.BlockSpec((SUBLANE, LANE), lambda i: (0, 0)),
            scratch_shapes=[pltpu.VMEM((SUBLANE, LANE), jnp.float32)],
        ),
        compiler_params=pltpu.CompilerParams(
            dimension_semantics=("arbitrary",)),
    )(p2d, t2d)
    return jnp.sum(part) / jnp.float32(n)


def fused_losses(pred, target, acc_map, occupancy):
    """loss_rgb = mean(smooth_l1(pred-target)); loss_mask = mean(|mask(acc)-occ|).

    Both reductions run in one pallas_call (one launch, shared pipeline).
    """
    p2d, n_rgb = _prep(pred)
    t2d, _ = _prep(target)
    a2d, n_mask = _prep(acc_map)
    o2d, _ = _prep(occupancy)

    tile_rgb = _tile_rows(p2d.shape[0])
    tile_mask = _tile_rows(a2d.shape[0])
    steps_rgb = pl.cdiv(p2d.shape[0], tile_rgb)
    steps_mask = pl.cdiv(a2d.shape[0], tile_mask)
    steps = max(steps_rgb, steps_mask)

    kernel = functools.partial(
        _fused_loss_kernel,
        n_rgb=n_rgb, n_mask=n_mask,
        steps_rgb=steps_rgb, steps_mask=steps_mask,
        tile_rgb=tile_rgb, tile_mask=tile_mask)

    rgb_part, mask_part = pl.pallas_call(
        kernel,
        out_shape=(jax.ShapeDtypeStruct((SUBLANE, LANE), jnp.float32),
                   jax.ShapeDtypeStruct((SUBLANE, LANE), jnp.float32)),
        grid_spec=pltpu.PrefetchScalarGridSpec(
            num_scalar_prefetch=0,
            grid=(steps,),
            in_specs=[
                pl.BlockSpec((tile_rgb, LANE), _clamped_index_map(steps_rgb)),
                pl.BlockSpec((tile_rgb, LANE), _clamped_index_map(steps_rgb)),
                pl.BlockSpec((tile_mask, LANE), _clamped_index_map(steps_mask)),
                pl.BlockSpec((tile_mask, LANE), _clamped_index_map(steps_mask)),
            ],
            out_specs=[
                pl.BlockSpec((SUBLANE, LANE), lambda i: (0, 0)),
                pl.BlockSpec((SUBLANE, LANE), lambda i: (0, 0)),
            ],
            scratch_shapes=[pltpu.VMEM((SUBLANE, LANE), jnp.float32),
                            pltpu.VMEM((SUBLANE, LANE), jnp.float32)],
        ),
        compiler_params=pltpu.CompilerParams(
            dimension_semantics=("arbitrary",)),
    )(p2d, t2d, a2d, o2d)

    loss_rgb = jnp.sum(rgb_part) / jnp.float32(n_rgb)
    loss_mask = jnp.sum(mask_part) / jnp.float32(n_mask)
    return loss_rgb, loss_mask


class SmoothL1Loss:
    """JAX/Pallas port of utils.loss.SmoothL1Loss.forward."""

    def __init__(self, cfg):
        self.cfg = cfg

    def __call__(self, inputs, batch):
        rgb = batch["rgb"].reshape(-1, 3)
        if self.cfg.MODEL.LOSSwMask:
            # TODO(synk): PyTorch mutates inputs['acc_map'] in place
            # (acc_map[occ==1]=1); here the mask is applied functionally inside
            # the kernel and the caller's array is left untouched.
            occupancy = batch["occupancy"].reshape(-1)
            loss_rgb, loss_mask = fused_losses(
                inputs["color"], rgb, inputs["acc_map"], occupancy)
            return {"loss_rgb": loss_rgb, "loss_mask": 0.1 * loss_mask}
        return {"loss_rgb": smooth_l1_loss_mean(inputs["color"], rgb)}


# ----------------------------- driver ---------------------------------------- #

if __name__ == "__main__":
    cfg = SimpleNamespace(MODEL=SimpleNamespace(LOSSwMask=True))
    loss_mod = SmoothL1Loss(cfg)

    key = jax.random.PRNGKey(0)
    k1, k2, k3, k4 = jax.random.split(key, 4)

    B, R = 2, 1024            # batch of 2, 1024 rays each -> N = 2048 samples
    N = B * R

    color = jax.random.uniform(k1, (N, 3), jnp.float32)          # predicted rgb
    rgb = jax.random.uniform(k2, (B, R, 3), jnp.float32)          # target rgb
    acc_map = jax.random.uniform(k3, (N,), jnp.float32)           # accumulated alpha
    occupancy = (jax.random.uniform(k4, (B, R)) > 0.5).astype(jnp.float32)

    inputs = {"color": color, "acc_map": acc_map}
    batch = {"rgb": rgb, "occupancy": occupancy}

    ret = loss_mod(inputs, batch)
    ret = jax.tree_util.tree_map(jax.block_until_ready, ret)

    # also exercise the standalone (LOSSwMask=False) kernel path
    loss_rgb_single = jax.block_until_ready(
        smooth_l1_loss_mean(color, rgb.reshape(-1, 3)))

    # lightweight sanity check vs. plain-JAX reference
    d = color - rgb.reshape(-1, 3)
    ad = jnp.abs(d)
    ref_rgb = jnp.mean(jnp.where(ad < 1.0, 0.5 * d * d, ad - 0.5))
    occ_f = occupancy.reshape(-1)
    am = jnp.where(occ_f == 1.0, 1.0, acc_map)
    ref_mask = 0.1 * jnp.mean(jnp.abs(am - occ_f))
    assert jnp.allclose(ret["loss_rgb"], ref_rgb, atol=1e-5)
    assert jnp.allclose(ret["loss_mask"], ref_mask, atol=1e-5)
    assert jnp.allclose(loss_rgb_single, ref_rgb, atol=1e-5)

    print("KERNEL_OK")
</pallas_src>

<mosaic_0001>
module attributes {stable_mosaic.version = 11 : i64} {
  func.func @_fused_loss_kernel(%arg0: i32, %arg1: memref<48x128xf32, #tpu.memory_space<vmem>>, %arg2: memref<48x128xf32, #tpu.memory_space<vmem>>, %arg3: memref<16x128xf32, #tpu.memory_space<vmem>>, %arg4: memref<16x128xf32, #tpu.memory_space<vmem>>, %arg5: memref<8x128xf32, #tpu.memory_space<vmem>>, %arg6: memref<8x128xf32, #tpu.memory_space<vmem>>, %arg7: memref<8x128xf32, #tpu.memory_space<vmem>>, %arg8: memref<8x128xf32, #tpu.memory_space<vmem>>) attributes {dimension_semantics = [#tpu.dimension_semantics<arbitrary>], iteration_bounds = array<i64: 1>, scalar_prefetch = 0 : i64, scratch_operands = 2 : i64, tpu.core_type = #tpu.core_type<tc>, window_params = [{transform_indices = @transform_0, window_bounds = array<i64: 48, 128>}, {transform_indices = @transform_1, window_bounds = array<i64: 48, 128>}, {transform_indices = @transform_2, window_bounds = array<i64: 16, 128>}, {transform_indices = @transform_3, window_bounds = array<i64: 16, 128>}, {pipeline_mode = #tpu.pipeline_mode<synchronous>, transform_indices = @transform_4, window_bounds = array<i64: 8, 128>}, {pipeline_mode = #tpu.pipeline_mode<synchronous>, transform_indices = @transform_5, window_bounds = array<i64: 8, 128>}]} {
    %c0_i32 = arith.constant 0 : i32
    %0 = arith.cmpi eq, %arg0, %c0_i32 : i32
    %1 = arith.extui %0 : i1 to i32
    %c0_i32_0 = arith.constant 0 : i32
    %2 = arith.cmpi ne, %1, %c0_i32_0 : i32
    scf.if %2 {
      %cst = arith.constant 0.000000e+00 : f32
      %12 = vector.broadcast %cst : f32 to vector<8x128xf32>
      %c0 = arith.constant 0 : index
      %c0_6 = arith.constant 0 : index
      %13 = vector.load %arg7[%c0, %c0_6] : memref<8x128xf32, #tpu.memory_space<vmem>>, vector<8x128xf32>
      tpu.vector_store %arg7[%c0, %c0_6], %12 {strides = array<i32>} : memref<8x128xf32, #tpu.memory_space<vmem>>, vector<8x128xf32>,
      %cst_7 = arith.constant 0.000000e+00 : f32
      %14 = vector.broadcast %cst_7 : f32 to vector<8x128xf32>
      %c0_8 = arith.constant 0 : index
      %c0_9 = arith.constant 0 : index
      %15 = vector.load %arg8[%c0_8, %c0_9] : memref<8x128xf32, #tpu.memory_space<vmem>>, vector<8x128xf32>
      tpu.vector_store %arg8[%c0_8, %c0_9], %14 {strides = array<i32>} : memref<8x128xf32, #tpu.memory_space<vmem>>, vector<8x128xf32>,
    } else {
    }
    %c1_i32 = arith.constant 1 : i32
    %3 = arith.cmpi slt, %arg0, %c1_i32 : i32
    %4 = arith.extui %3 : i1 to i32
    %c0_i32_1 = arith.constant 0 : i32
    %5 = arith.cmpi ne, %4, %c0_i32_1 : i32
    scf.if %5 {
      %c0 = arith.constant 0 : index
      %c0_6 = arith.constant 0 : index
      %12 = vector.load %arg1[%c0, %c0_6] : memref<48x128xf32, #tpu.memory_space<vmem>>, vector<48x128xf32>
      %c0_7 = arith.constant 0 : index
      %c0_8 = arith.constant 0 : index
      %13 = vector.load %arg2[%c0_7, %c0_8] : memref<48x128xf32, #tpu.memory_space<vmem>>, vector<48x128xf32>
      %14 = arith.subf %12, %13 : vector<48x128xf32>
      %15 = math.absf %14 : vector<48x128xf32>
      %cst = arith.constant 1.000000e+00 : f32
      %16 = vector.broadcast %cst : f32 to vector<48x128xf32>
      %17 = arith.cmpf olt, %15, %16 : vector<48x128xf32>
      %cst_9 = arith.constant 5.000000e-01 : f32
      %18 = vector.broadcast %cst_9 : f32 to vector<48x128xf32>
      %19 = arith.mulf %18, %14 : vector<48x128xf32>
      %20 = arith.mulf %19, %14 : vector<48x128xf32>
      %cst_10 = arith.constant 5.000000e-01 : f32
      %21 = vector.broadcast %cst_10 : f32 to vector<48x128xf32>
      %22 = arith.subf %15, %21 : vector<48x128xf32>
      %23 = arith.select %17, %20, %22 : vector<48x128xi1>, vector<48x128xf32>
      %24 = tpu.iota {dimensions = array<i32: 0>} : vector<48x128xi32>
      %25 = tpu.iota {dimensions = array<i32: 1>} : vector<48x128xi32>
      %c48_i32 = arith.constant 48 : i32
      %26 = arith.muli %arg0, %c48_i32 : i32
      %27 = vector.broadcast %26 : i32 to vector<48x128xi32>
      %28 = arith.addi %27, %24 : vector<48x128xi32>
      %c128_i32 = arith.constant 128 : i32
      %29 = vector.broadcast %c128_i32 : i32 to vector<48x128xi32>
      %30 = arith.muli %28, %29 : vector<48x128xi32>
      %31 = arith.addi %30, %25 : vector<48x128xi32>
      %c6144_i32 = arith.constant 6144 : i32
      %32 = vector.broadcast %c6144_i32 : i32 to vector<48x128xi32>
      %33 = arith.cmpi slt, %31, %32 : vector<48x128xi32>
      %cst_11 = arith.constant 0.000000e+00 : f32
      %34 = vector.broadcast %cst_11 : f32 to vector<48x128xf32>
      %35 = arith.select %33, %23, %34 : vector<48x128xi1>, vector<48x128xf32>
      %c0_12 = arith.constant 0 : index
      %c0_13 = arith.constant 0 : index
      %36 = vector.load %arg7[%c0_12, %c0_13] : memref<8x128xf32, #tpu.memory_space<vmem>>, vector<8x128xf32>
      %37 = vector.shape_cast %35 : vector<48x128xf32> to vector<6x8x128xf32>
      %cst_14 = arith.constant dense<0.000000e+00> : vector<8x128xf32>
      %38 = vector.multi_reduction <add>, %37, %cst_14 [0] : vector<6x8x128xf32> to vector<8x128xf32>
      %39 = arith.addf %36, %38 : vector<8x128xf32>
      %c0_15 = arith.constant 0 : index
      %c0_16 = arith.constant 0 : index
      %40 = vector.load %arg7[%c0_15, %c0_16] : memref<8x128xf32, #tpu.memory_space<vmem>>, vector<8x128xf32>
      tpu.vector_store %arg7[%c0_15, %c0_16], %39 {strides = array<i32>} : memref<8x128xf32, #tpu.memory_space<vmem>>, vector<8x128xf32>,
    } else {
    }
    %c1_i32_2 = arith.constant 1 : i32
    %6 = arith.cmpi slt, %arg0, %c1_i32_2 : i32
    %7 = arith.extui %6 : i1 to i32
    %c0_i32_3 = arith.constant 0 : i32
    %8 = arith.cmpi ne, %7, %c0_i32_3 : i32
    scf.if %8 {
      %c0 = arith.constant 0 : index
      %c0_6 = arith.constant 0 : index
      %12 = vector.load %arg3[%c0, %c0_6] : memref<16x128xf32, #tpu.memory_space<vmem>>, vector<16x128xf32>
      %c0_7 = arith.constant 0 : index
      %c0_8 = arith.constant 0 : index
      %13 = vector.load %arg4[%c0_7, %c0_8] : memref<16x128xf32, #tpu.memory_space<vmem>>, vector<16x128xf32>
      %cst = arith.constant 1.000000e+00 : f32
      %14 = vector.broadcast %cst : f32 to vector<16x128xf32>
      %15 = arith.cmpf oeq, %13, %14 : vector<16x128xf32>
      %cst_9 = arith.constant 1.000000e+00 : f32
      %16 = vector.broadcast %cst_9 : f32 to vector<16x128xf32>
      %17 = arith.select %15, %16, %12 : vector<16x128xi1>, vector<16x128xf32>
      %18 = arith.subf %17, %13 : vector<16x128xf32>
      %19 = math.absf %18 : vector<16x128xf32>
      %20 = tpu.iota {dimensions = array<i32: 0>} : vector<16x128xi32>
      %21 = tpu.iota {dimensions = array<i32: 1>} : vector<16x128xi32>
      %c16_i32 = arith.constant 16 : i32
      %22 = arith.muli %arg0, %c16_i32 : i32
      %23 = vector.broadcast %22 : i32 to vector<16x128xi32>
      %24 = arith.addi %23, %20 : vector<16x128xi32>
      %c128_i32 = arith.constant 128 : i32
      %25 = vector.broadcast %c128_i32 : i32 to vector<16x128xi32>
      %26 = arith.muli %24, %25 : vector<16x128xi32>
      %27 = arith.addi %26, %21 : vector<16x128xi32>
      %c2048_i32 = arith.constant 2048 : i32
      %28 = vector.broadcast %c2048_i32 : i32 to vector<16x128xi32>
      %29 = arith.cmpi slt, %27, %28 : vector<16x128xi32>
      %cst_10 = arith.constant 0.000000e+00 : f32
      %30 = vector.broadcast %cst_10 : f32 to vector<16x128xf32>
      %31 = arith.select %29, %19, %30 : vector<16x128xi1>, vector<16x128xf32>
      %c0_11 = arith.constant 0 : index
      %c0_12 = arith.constant 0 : index
      %32 = vector.load %arg8[%c0_11, %c0_12] : memref<8x128xf32, #tpu.memory_space<vmem>>, vector<8x128xf32>
      %33 = vector.shape_cast %31 : vector<16x128xf32> to vector<2x8x128xf32>
      %cst_13 = arith.constant dense<0.000000e+00> : vector<8x128xf32>
      %34 = vector.multi_reduction <add>, %33, %cst_13 [0] : vector<2x8x128xf32> to vector<8x128xf32>
      %35 = arith.addf %32, %34 : vector<8x128xf32>
      %c0_14 = arith.constant 0 : index
      %c0_15 = arith.constant 0 : index
      %36 = vector.load %arg8[%c0_14, %c0_15] : memref<8x128xf32, #tpu.memory_space<vmem>>, vector<8x128xf32>
      tpu.vector_store %arg8[%c0_14, %c0_15], %35 {strides = array<i32>} : memref<8x128xf32, #tpu.memory_space<vmem>>, vector<8x128xf32>,
    } else {
    }
    %c0_i32_4 = arith.constant 0 : i32
    %9 = arith.cmpi eq, %arg0, %c0_i32_4 : i32
    %10 = arith.extui %9 : i1 to i32
    %c0_i32_5 = arith.constant 0 : i32
    %11 = arith.cmpi ne, %10, %c0_i32_5 : i32
    scf.if %11 {
      %c0 = arith.constant 0 : index
      %c0_6 = arith.constant 0 : index
      %12 = vector.load %arg7[%c0, %c0_6] : memref<8x128xf32, #tpu.memory_space<vmem>>, vector<8x128xf32>
      %c0_7 = arith.constant 0 : index
      %c0_8 = arith.constant 0 : index
      %13 = vector.load %arg5[%c0_7, %c0_8] : memref<8x128xf32, #tpu.memory_space<vmem>>, vector<8x128xf32>
      tpu.vector_store %arg5[%c0_7, %c0_8], %12 {strides = array<i32>} : memref<8x128xf32, #tpu.memory_space<vmem>>, vector<8x128xf32>,
      %c0_9 = arith.constant 0 : index
      %c0_10 = arith.constant 0 : index
      %14 = vector.load %arg8[%c0_9, %c0_10] : memref<8x128xf32, #tpu.memory_space<vmem>>, vector<8x128xf32>
      %c0_11 = arith.constant 0 : index
      %c0_12 = arith.constant 0 : index
      %15 = vector.load %arg6[%c0_11, %c0_12] : memref<8x128xf32, #tpu.memory_space<vmem>>, vector<8x128xf32>
      tpu.vector_store %arg6[%c0_11, %c0_12], %14 {strides = array<i32>} : memref<8x128xf32, #tpu.memory_space<vmem>>, vector<8x128xf32>,
    } else {
    }
    return
  }
  func.func @transform_0(%arg0: i32) -> (i32, i32) {
    %c0_i32 = arith.constant 0 : i32
    %0 = arith.minsi %arg0, %c0_i32 : i32
    %c0_i32_0 = arith.constant 0 : i32
    %c0_i32_1 = arith.constant 0 : i32
    return %0, %c0_i32_0 : i32, i32
  }
  func.func @transform_1(%arg0: i32) -> (i32, i32) {
    %c0_i32 = arith.constant 0 : i32
    %0 = arith.minsi %arg0, %c0_i32 : i32
    %c0_i32_0 = arith.constant 0 : i32
    %c0_i32_1 = arith.constant 0 : i32
    return %0, %c0_i32_0 : i32, i32
  }
  func.func @transform_2(%arg0: i32) -> (i32, i32) {
    %c0_i32 = arith.constant 0 : i32
    %0 = arith.minsi %arg0, %c0_i32 : i32
    %c0_i32_0 = arith.constant 0 : i32
    %c0_i32_1 = arith.constant 0 : i32
    return %0, %c0_i32_0 : i32, i32
  }
  func.func @transform_3(%arg0: i32) -> (i32, i32) {
    %c0_i32 = arith.constant 0 : i32
    %0 = arith.minsi %arg0, %c0_i32 : i32
    %c0_i32_0 = arith.constant 0 : i32
    %c0_i32_1 = arith.constant 0 : i32
    return %0, %c0_i32_0 : i32, i32
  }
  func.func @transform_4(%arg0: i32) -> (i32, i32) {
    %c0_i32 = arith.constant 0 : i32
    %c0_i32_0 = arith.constant 0 : i32
    %c0_i32_1 = arith.constant 0 : i32
    return %c0_i32, %c0_i32_0 : i32, i32
  }
  func.func @transform_5(%arg0: i32) -> (i32, i32) {
    %c0_i32 = arith.constant 0 : i32
    %c0_i32_0 = arith.constant 0 : i32
    %c0_i32_1 = arith.constant 0 : i32
    return %c0_i32, %c0_i32_0 : i32, i32
  }
}

</mosaic_0001>

<llo_original>
// kernel: tpu_custom_call.1
$region0: #{tpu_custom_call.1}
  #allocation0 [shape = 'u32[]', space=smem, size = 0x4, offset = 0x4, fixed_abs, tag = 'smem constant byte address 0x4 - core index']
  #allocation1 [shape = 'u32[72,128]{1,0:T(1,128)}', space=vmem, size = 0x9000, scoped, tag = 'internal scratch']
  #allocation2 [shape = 'f32[8,128]{1,0:T(8,128)}', space=vmem, size = 0x1000, scoped, tag = 'scratch operand']
  #allocation3 [shape = 'f32[8,128]{1,0:T(8,128)}', space=vmem, size = 0x1000, scoped, tag = 'scratch operand']
  %s0 = inlined_call_operand.hbm [shape: f32[48,128], index: 0, kind: input, shape index: {}]
  %s1 = inlined_call_operand.hbm [shape: f32[48,128], index: 1, kind: input, shape index: {}]
  %s2 = inlined_call_operand.hbm [shape: f32[16,128], index: 2, kind: input, shape index: {}]
  %s3 = inlined_call_operand.hbm [shape: f32[16,128], index: 3, kind: input, shape index: {}]
  %s4 = inlined_call_operand.hbm [shape: f32[8,128], index: 4, kind: output, shape index: {0}]
  %s5 = inlined_call_operand.hbm [shape: f32[8,128], index: 5, kind: output, shape index: {1}]
  %6 = xla_tuple %s4, %s5
  %s7 = sld [smem:[#allocation0]]
  $region62: #{tpu_custom_call.1} parent=0
    _
  %s9 = ssub.s32 1, %s7
  %s10 = scalar_select 0, %s9, %s7
  $region1: #{tpu_custom_call.1} parent=0
    #allocation4 [shape = 'u8[24576]{0}', space=vmem, size = 0x6000, scoped, tag = 'input window, operand 0, single buffered']
    #allocation5 [shape = 's32[1]{0}', space=sflag, size = 0x4, scoped, tag = 'scoped memory for tpu_custom_call.1']
    #allocation6 [shape = 's32[1]{0}', space=sflag, size = 0x4, scoped, tag = 'scoped memory for tpu_custom_call.1']
    #allocation7 [shape = 'u8[24576]{0}', space=vmem, size = 0x6000, scoped, tag = 'input window, operand 1, single buffered']
    #allocation8 [shape = 's32[1]{0}', space=sflag, size = 0x4, scoped, tag = 'scoped memory for tpu_custom_call.1']
    #allocation9 [shape = 'u8[8192]{0}', space=vmem, size = 0x2000, scoped, tag = 'input window, operand 2, single buffered']
    #allocation10 [shape = 'u8[8192]{0}', space=vmem, size = 0x2000, scoped, tag = 'input window, operand 3, single buffered']
    #allocation11 [shape = 's32[1]{0}', space=sflag, size = 0x4, scoped, tag = 'scoped memory for tpu_custom_call.1']
    #allocation12 [shape = 'u8[4096]{0}', space=vmem, size = 0x1000, scoped, tag = 'output window, operand 0, single buffered']
    #allocation13 [shape = 'u8[4096]{0}', space=vmem, size = 0x1000, scoped, tag = 'output window, operand 1, single buffered']
    #allocation14 [shape = 's32[1]{0}', space=sflag, size = 0x4, scoped, tag = 'scoped memory for tpu_custom_call.1']
    %11 = vsyncpa [#allocation5], 0
    %12 = vsyncpa [#allocation8], 0
    %13 = vsyncpa [#allocation11], 0
    %14 = vsyncpa [#allocation6], 0
    %15 = vsyncpa [#allocation14], 0
    // Predicated region
    $region2: #{tpu_custom_call.1} parent=1 // pred_check
      _
    $region3: #{tpu_custom_call.1} parent=1 // pred_check_branch
      %17 = sbr.rel (0) target = $region5
    $region4: #{tpu_custom_call.1} parent=1 // pred_region
      %19 = vsyncadd [#allocation5], 0
      %s20 = sshll.u32 %s0, 4
      %s21 = int_to_ptr.hbm [resolvable:$true] %s20
      %s22 = sshll.u32 [#allocation4], 4
      %s23 = int_to_ptr.vmem [resolvable:$true] %s22
      %28 = dma.hbm_to_vmem [thread:$0]  %s21, 768, %s23, [#allocation5], 128, 128, 8
    $region5: #{tpu_custom_call.1} parent=1 // pred_fallthru
      _
    // Predicated region
    $region6: #{tpu_custom_call.1} parent=1 // pred_check
      _
    $region7: #{tpu_custom_call.1} parent=1 // pred_check_branch
      %30 = sbr.rel (0) target = $region9
    $region8: #{tpu_custom_call.1} parent=1 // pred_region
      %32 = vsyncadd [#allocation8], 0
      %s33 = sshll.u32 %s1, 4
      %s34 = int_to_ptr.hbm [resolvable:$true] %s33
      %s35 = sshll.u32 [#allocation7], 4
      %s36 = int_to_ptr.vmem [resolvable:$true] %s35
      %41 = dma.hbm_to_vmem [thread:$0]  %s34, 768, %s36, [#allocation8], 128, 128, 8
    $region9: #{tpu_custom_call.1} parent=1 // pred_fallthru
      _
    // Predicated region
    $region10: #{tpu_custom_call.1} parent=1 // pred_check
      _
    $region11: #{tpu_custom_call.1} parent=1 // pred_check_branch
      %43 = sbr.rel (0) target = $region13
    $region12: #{tpu_custom_call.1} parent=1 // pred_region
      %45 = vsyncadd [#allocation8], 0
      %s46 = sshll.u32 %s2, 4
      %s47 = int_to_ptr.hbm [resolvable:$true] %s46
      %s48 = sshll.u32 [#allocation9], 4
      %s49 = int_to_ptr.vmem [resolvable:$true] %s48
      %54 = dma.hbm_to_vmem [thread:$0]  %s47, 256, %s49, [#allocation8], 128, 128, 8
    $region13: #{tpu_custom_call.1} parent=1 // pred_fallthru
      _
    // Predicated region
    $region14: #{tpu_custom_call.1} parent=1 // pred_check
      _
    $region15: #{tpu_custom_call.1} parent=1 // pred_check_branch
      %56 = sbr.rel (0) target = $region17
    $region16: #{tpu_custom_call.1} parent=1 // pred_region
      %58 = vsyncadd [#allocation11], 0
      %s59 = sshll.u32 %s3, 4
      %s60 = int_to_ptr.hbm [resolvable:$true] %s59
      %s61 = sshll.u32 [#allocation10], 4
      %s62 = int_to_ptr.vmem [resolvable:$true] %s61
      %67 = dma.hbm_to_vmem [thread:$0]  %s60, 256, %s62, [#allocation11], 128, 128, 8
    $region17: #{tpu_custom_call.1} parent=1 // pred_fallthru
      _
    // Predicated region
    $region18: #{tpu_custom_call.1} parent=1 // pred_check
      _
    $region19: #{tpu_custom_call.1} parent=1 // pred_check_branch
      %69 = sbr.rel (0) target = $region21
    $region20: #{tpu_custom_call.1} parent=1 // pred_region
      %71 = dma.done [#allocation5], 768
    $region21: #{tpu_custom_call.1} parent=1 // pred_fallthru
      _
    // Predicated region
    $region22: #{tpu_custom_call.1} parent=1 // pred_check
      _
    $region23: #{tpu_custom_call.1} parent=1 // pred_check_branch
      %73 = sbr.rel (0) target = $region25
    $region24: #{tpu_custom_call.1} parent=1 // pred_region
      %75 = dma.done [#allocation8], 768
    $region25: #{tpu_custom_call.1} parent=1 // pred_fallthru
      _
    // Predicated region
    $region26: #{tpu_custom_call.1} parent=1 // pred_check
      _
    $region27: #{tpu_custom_call.1} parent=1 // pred_check_branch
      %77 = sbr.rel (0) target = $region29
    $region28: #{tpu_custom_call.1} parent=1 // pred_region
      %79 = dma.done [#allocation8], 256
    $region29: #{tpu_custom_call.1} parent=1 // pred_fallthru
      _
    // Predicated region
    $region30: #{tpu_custom_call.1} parent=1 // pred_check
      _
    $region31: #{tpu_custom_call.1} parent=1 // pred_check_branch
      %81 = sbr.rel (0) target = $region33
    $region32: #{tpu_custom_call.1} parent=1 // pred_region
      %83 = dma.done [#allocation11], 256
    $region33: #{tpu_custom_call.1} parent=1 // pred_fallthru
      _
    %p84 = scmp.eq.s32.totalorder 0, 0
    // Predicated region
    $region34: #{tpu_custom_call.1} parent=1 // pred_check
      %p85 = pneg %p84
    $region35: #{tpu_custom_call.1} parent=1 // pred_check_branch
      %87 = sbr.rel (%p85) target = $region37
    $region36: #{tpu_custom_call.1} parent=1 // pred_region
      %88 = vst [vmem:[#allocation2] sm:$0xff] 0.0
      %89 = vst [vmem:[#allocation3] sm:$0xff] 0.0
    $region37: #{tpu_custom_call.1} parent=1 // pred_fallthru
      _
    %p90 = scmp.lt.s32.totalorder 0, 1
    // Predicated region
    $region38: #{tpu_custom_call.1} parent=1 // pred_check
      %p91 = pneg %p90
    $region39: #{tpu_custom_call.1} parent=1 // pred_check_branch
      %93 = sbr.rel (%p91) target = $region41
    $region40: #{tpu_custom_call.1} parent=1 // pred_region
      %v94 = vld [vmem:[#allocation4] sm:$0xff]
      %v95 = vld [vmem:[#allocation4 + $0x8] sm:$0xff]
      %v96 = vld [vmem:[#allocation4 + $0x10] sm:$0xff]
      %v97 = vld [vmem:[#allocation4 + $0x18] sm:$0xff]
      %v98 = vld [vmem:[#allocation4 + $0x20] sm:$0xff]
      %v99 = vld [vmem:[#allocation4 + $0x28] sm:$0xff]
      %v100 = vld [vmem:[#allocation7] sm:$0xff]
      %v101 = vld [vmem:[#allocation7 + $0x8] sm:$0xff]
      %v102 = vld [vmem:[#allocation7 + $0x10] sm:$0xff]
      %v103 = vld [vmem:[#allocation7 + $0x18] sm:$0xff]
      %v104 = vld [vmem:[#allocation7 + $0x20] sm:$0xff]
      %v105 = vld [vmem:[#allocation7 + $0x28] sm:$0xff]
      %v106 = vsub.f32 %v94, %v100
      %v107 = vsub.f32 %v95, %v101
      %v108 = vsub.f32 %v96, %v102
      %v109 = vsub.f32 %v97, %v103
      %v110 = vsub.f32 %v98, %v104
      %v111 = vsub.f32 %v99, %v105
      %v112 = vand.u32 2147483647, %v106
      %v113 = vand.u32 2147483647, %v107
      %v114 = vand.u32 2147483647, %v108
      %v115 = vand.u32 2147483647, %v109
      %v116 = vand.u32 2147483647, %v110
      %v117 = vand.u32 2147483647, %v111
      %vm118 = vcmp.lt.f32.partialorder %v112, 1.0
      %vm119 = vcmp.lt.f32.partialorder %v113, 1.0
      %vm120 = vcmp.lt.f32.partialorder %v114, 1.0
      %vm121 = vcmp.lt.f32.partialorder %v115, 1.0
      %vm122 = vcmp.lt.f32.partialorder %v116, 1.0
      %vm123 = vcmp.lt.f32.partialorder %v117, 1.0
      %v124 = vmul.f32 %v106, 0.5
      %v125 = vmul.f32 %v107, 0.5
      %v126 = vmul.f32 %v108, 0.5
      %v127 = vmul.f32 %v109, 0.5
      %v128 = vmul.f32 %v110, 0.5
      %v129 = vmul.f32 %v111, 0.5
      %v130 = vmul.f32 %v124, %v106
      %v131 = vmul.f32 %v125, %v107
      %v132 = vmul.f32 %v126, %v108
      %v133 = vmul.f32 %v127, %v109
      %v134 = vmul.f32 %v128, %v110
      %v135 = vmul.f32 %v129, %v111
      %v136 = vsub.f32 %v112, 0.5
      %v137 = vsub.f32 %v113, 0.5
      %v138 = vsub.f32 %v114, 0.5
      %v139 = vsub.f32 %v115, 0.5
      %v140 = vsub.f32 %v116, 0.5
      %v141 = vsub.f32 %v117, 0.5
      %v142 = vsel %vm118, %v130, %v136
      %v143 = vsel %vm119, %v131, %v137
      %v144 = vsel %vm120, %v132, %v138
      %v145 = vsel %vm121, %v133, %v139
      %v146 = vsel %vm122, %v134, %v140
      %v147 = vsel %vm123, %v135, %v141
      %v148 = vlaneseq
      %v149 = vshrl.u32 %v148, 7
      %v150 = vadd.s32 %v149, 8
      %v151 = vadd.s32 %v149, 16
      %v152 = vadd.s32 %v149, 24
      %v153 = vadd.s32 %v149, 32
      %v154 = vadd.s32 %v149, 40
      %v155 = vlaneseq
      %v156 = vand.u32 %v155, 127
      %s157 = smul.u32 0, 48
      %v158 = vstv %s157
      %v159 = vadd.s32 %v158, %v149
      %v160 = vadd.s32 %v158, %v150
      %v161 = vadd.s32 %v158, %v151
      %v162 = vadd.s32 %v158, %v152
      %v163 = vadd.s32 %v158, %v153
      %v164 = vadd.s32 %v158, %v154
      %v165 = vmul.u32 %v159, 128
      %v166 = vmul.u32 %v160, 128
      %v167 = vmul.u32 %v161, 128
      %v168 = vmul.u32 %v162, 128
      %v169 = vmul.u32 %v163, 128
      %v170 = vmul.u32 %v164, 128
      %v171 = vadd.s32 %v165, %v156
      %v172 = vadd.s32 %v166, %v156
      %v173 = vadd.s32 %v167, %v156
      %v174 = vadd.s32 %v168, %v156
      %v175 = vadd.s32 %v169, %v156
      %v176 = vadd.s32 %v170, %v156
      %vm177 = vcmp.lt.s32.totalorder %v171, 6144
      %vm178 = vcmp.lt.s32.totalorder %v172, 6144
      %vm179 = vcmp.lt.s32.totalorder %v173, 6144
      %vm180 = vcmp.lt.s32.totalorder %v174, 6144
      %vm181 = vcmp.lt.s32.totalorder %v175, 6144
      %vm182 = vcmp.lt.s32.totalorder %v176, 6144
      %v183 = vsel %vm177, %v142, 0.0
      %v184 = vsel %vm178, %v143, 0.0
      %v185 = vsel %vm179, %v144, 0.0
      %v186 = vsel %vm180, %v145, 0.0
      %v187 = vsel %vm181, %v146, 0.0
      %v188 = vsel %vm182, %v147, 0.0
      %v189 = vld [vmem:[#allocation2] sm:$0xff]
      %v190 = vadd.f32 %v183, %v184
      %v191 = vadd.f32 %v190, %v185
      %v192 = vadd.f32 %v191, %v186
      %v193 = vadd.f32 %v192, %v187
      %v194 = vadd.f32 %v193, %v188
      %v195 = vadd.f32 %v189, %v194
      %196 = vst [vmem:[#allocation2] sm:$0xff] %v195
      %v197 = vld [vmem:[#allocation9] sm:$0xff]
      %v198 = vld [vmem:[#allocation9 + $0x8] sm:$0xff]
      %v199 = vld [vmem:[#allocation10] sm:$0xff]
      %v200 = vld [vmem:[#allocation10 + $0x8] sm:$0xff]
      %vm201 = vcmp.eq.f32.partialorder %v199, 1.0
      %vm202 = vcmp.eq.f32.partialorder %v200, 1.0
      %v203 = vsel %vm201, 1.0, %v197
      %v204 = vsel %vm202, 1.0, %v198
      %v205 = vsub.f32 %v203, %v199
      %v206 = vsub.f32 %v204, %v200
      %v207 = vand.u32 2147483647, %v205
      %v208 = vand.u32 2147483647, %v206
      %s209 = smul.u32 0, 16
      %v210 = vstv %s209
      %v211 = vadd.s32 %v210, %v149
      %v212 = vadd.s32 %v210, %v150
      %v213 = vmul.u32 %v211, 128
      %v214 = vmul.u32 %v212, 128
      %v215 = vadd.s32 %v213, %v156
      %v216 = vadd.s32 %v214, %v156
      %vm217 = vcmp.lt.s32.totalorder %v215, 2048
      %vm218 = vcmp.lt.s32.totalorder %v216, 2048
      %v219 = vsel %vm217, %v207, 0.0
      %v220 = vsel %vm218, %v208, 0.0
      %v221 = vld [vmem:[#allocation3] sm:$0xff]
      %v222 = vadd.f32 %v219, %v220
      %v223 = vadd.f32 %v221, %v222
      %224 = vst [vmem:[#allocation3] sm:$0xff] %v223
    $region41: #{tpu_custom_call.1} parent=1 // pred_fallthru
      _
    // Predicated region
    $region42: #{tpu_custom_call.1} parent=1 // pred_check
      %p225 = pneg %p84
    $region43: #{tpu_custom_call.1} parent=1 // pred_check_branch
      %227 = sbr.rel (%p225) target = $region45
    $region44: #{tpu_custom_call.1} parent=1 // pred_region
      %v228 = vld [vmem:[#allocation2] sm:$0xff]
      %229 = vst [vmem:[#allocation12] sm:$0xff] %v228
      %v230 = vld [vmem:[#allocation3] sm:$0xff]
      %231 = vst [vmem:[#allocation13] sm:$0xff] %v230
    $region45: #{tpu_custom_call.1} parent=1 // pred_fallthru
      _
    // Predicated region
    $region46: #{tpu_custom_call.1} parent=1 // pred_check
      _
    $region47: #{tpu_custom_call.1} parent=1 // pred_check_branch
      %233 = sbr.rel (0) target = $region49
    $region48: #{tpu_custom_call.1} parent=1 // pred_region
      %235 = vsyncadd [#allocation6], 0
      %s237 = sshll.u32 [#allocation12], 4
      %s238 = int_to_ptr.vmem [resolvable:$true] %s237
      %s239 = sshll.u32 %s4, 4
      %s240 = int_to_ptr.hbm [resolvable:$true] %s239
      %242 = dma.vmem_to_hbm [thread:$0]  %s238, 128, %s240, [#allocation6]
    $region49: #{tpu_custom_call.1} parent=1 // pred_fallthru
      _
    // Predicated region
    $region50: #{tpu_custom_call.1} parent=1 // pred_check
      _
    $region51: #{tpu_custom_call.1} parent=1 // pred_check_branch
      %244 = sbr.rel (0) target = $region53
    $region52: #{tpu_custom_call.1} parent=1 // pred_region
      %246 = vsyncadd [#allocation14], 0
      %s248 = sshll.u32 [#allocation13], 4
      %s249 = int_to_ptr.vmem [resolvable:$true] %s248
      %s250 = sshll.u32 %s5, 4
      %s251 = int_to_ptr.hbm [resolvable:$true] %s250
      %253 = dma.vmem_to_hbm [thread:$0]  %s249, 128, %s251, [#allocation14]
    $region53: #{tpu_custom_call.1} parent=1 // pred_fallthru
      _
    // Predicated region
    $region54: #{tpu_custom_call.1} parent=1 // pred_check
      _
    $region55: #{tpu_custom_call.1} parent=1 // pred_check_branch
      %255 = sbr.rel (0) target = $region57
    $region56: #{tpu_custom_call.1} parent=1 // pred_region
      %257 = dma.done [#allocation6], 128
    $region57: #{tpu_custom_call.1} parent=1 // pred_fallthru
      _
    // Predicated region
    $region58: #{tpu_custom_call.1} parent=1 // pred_check
      _
    $region59: #{tpu_custom_call.1} parent=1 // pred_check_branch
      %259 = sbr.rel (0) target = $region61
    $region60: #{tpu_custom_call.1} parent=1 // pred_region
      %261 = dma.done [#allocation14], 128
    $region61: #{tpu_custom_call.1} parent=1 // pred_fallthru
      _
    %262 = vsyncpa [#allocation5], 1
    %263 = vsyncpa [#allocation8], 1
    %264 = vsyncpa [#allocation11], 1
    %265 = vsyncpa [#allocation6], 1
    %266 = vsyncpa [#allocation14], 1

</llo_original>
